<compile_context>
chip_gen: v5e
topology: v5e:2x2
jax: 0.10.0
libtpu: 0.0.40
codegen_flags: <defaults>
</compile_context>

<pallas_src>
import numpy as np
import jax
import jax.numpy as jnp
from jax import lax
from jax.experimental import pallas as pl
from jax.experimental.pallas import tpu as pltpu


def _round_up(x, m):
    return ((x + m - 1) // m) * m


def _proto_kernel(xs_ref, xq_ref, w_ref, b_ref, onehot_ref, out_ref,
                  acc_s_ref, acc_q_ref):
    """Grid = (query_blocks, k_tiles); k (reduction over F) is the last axis.

    xs_ref:     (S_pad, tk)        bf16 support image tile (same for every qb)
    xq_ref:     (TQ,    tk)        bf16 query image tile for this query block
    w_ref:      (tk,    D_pad)     bf16 backbone weight tile
    b_ref:      (1,     D_pad)     f32 bias
    onehot_ref: (W_pad, S_pad)     f32 one-hot mask with 1/count folded in
    out_ref:    (TQ,    W_pad)     f32 scores = -euclidean distance
    acc_*_ref:  f32 VMEM accumulators for the backbone matmul
    """
    kt = pl.program_id(1)

    @pl.when(kt == 0)
    def _():
        acc_s_ref[...] = jnp.zeros_like(acc_s_ref)
        acc_q_ref[...] = jnp.zeros_like(acc_q_ref)

    w = w_ref[...]
    acc_s_ref[...] += jnp.dot(xs_ref[...], w, preferred_element_type=jnp.float32)
    acc_q_ref[...] += jnp.dot(xq_ref[...], w, preferred_element_type=jnp.float32)

    @pl.when(kt == pl.num_programs(1) - 1)
    def _():
        b = b_ref[...]
        z_support = acc_s_ref[...] + b                       # (S_pad, D_pad) f32
        z_query = acc_q_ref[...] + b                         # (TQ,    D_pad) f32

        # Prototypes: (scaled one-hot) @ z_support -> per-class mean, one MXU op.
        protos = jnp.dot(onehot_ref[...], z_support,
                         preferred_element_type=jnp.float32)  # (W_pad, D_pad)

        # -cdist via quadratic expansion, all in f32.
        q_sq = jnp.sum(z_query * z_query, axis=-1, keepdims=True)      # (TQ, 1)
        p_sq = jnp.sum(protos * protos, axis=-1).reshape(1, -1)        # (1, W_pad)
        cross = lax.dot_general(
            z_query, protos,
            dimension_numbers=(((1,), (1,)), ((), ())),
            preferred_element_type=jnp.float32)                        # (TQ, W_pad)
        d2 = jnp.maximum(q_sq + p_sq - 2.0 * cross, 0.0)
        out_ref[...] = -jnp.sqrt(d2)


def prototypical_forward(support_images, support_labels, query_images, w, b,
                         *, tk=512):
    """JAX wrapper reproducing PrototypicalNetworks.forward semantics."""
    n_support = support_images.shape[0]
    n_query = query_images.shape[0]
    feat_in = int(np.prod(support_images.shape[1:]))
    d = w.shape[1]

    # Static label bookkeeping on host (mirrors torch.unique + python loop).
    labels_np = np.asarray(support_labels)
    n_way = int(len(np.unique(labels_np)))
    counts = np.array([(labels_np == c).sum() for c in range(n_way)], np.float64)
    assert (counts > 0).all(), (
        "every class in range(n_way) needs at least one support example")

    # Padded geometry: 16-row sublane grain (bf16 packing), 128-lane grain.
    s_pad = _round_up(max(n_support, 1), 16)
    tq = 128 if n_query > 128 else _round_up(max(n_query, 1), 16)
    q_pad = _round_up(n_query, tq)
    d_pad = _round_up(d, 128)
    f_pad = _round_up(feat_in, 128)
    tk = min(_round_up(tk, 128), f_pad)
    f_pad = _round_up(f_pad, tk)
    w_pad_classes = 128  # lane-dense output: class dim padded to a full vreg row

    # Pre-cast once to bf16 (halves HBM->VMEM bytes for the two big operands);
    # zero-padding of the extra rows / features / columns is numerically inert.
    xs = jnp.reshape(support_images, (n_support, feat_in)).astype(jnp.bfloat16)
    xq = jnp.reshape(query_images, (n_query, feat_in)).astype(jnp.bfloat16)
    xs = jnp.pad(xs, ((0, s_pad - n_support), (0, f_pad - feat_in)))
    xq = jnp.pad(xq, ((0, q_pad - n_query), (0, f_pad - feat_in)))
    w_p = jnp.pad(jnp.asarray(w).astype(jnp.bfloat16),
                  ((0, f_pad - feat_in), (0, d_pad - d)))
    b_p = jnp.pad(jnp.reshape(b, (1, d)).astype(jnp.float32),
                  ((0, 0), (0, d_pad - d)))

    # One-hot mask with 1/count folded in; prototype order follows
    # `for label in range(n_way)` exactly as in the torch code.
    onehot = np.zeros((w_pad_classes, s_pad), np.float32)
    for c in range(n_way):
        onehot[c, :n_support] = (labels_np == c).astype(np.float32) / counts[c]
    onehot = jnp.asarray(onehot)

    qb_blocks = q_pad // tq
    kt_blocks = f_pad // tk

    grid_spec = pltpu.PrefetchScalarGridSpec(
        num_scalar_prefetch=0,
        grid=(qb_blocks, kt_blocks),
        in_specs=[
            pl.BlockSpec((s_pad, tk), lambda qb, kt: (0, kt)),
            pl.BlockSpec((tq, tk), lambda qb, kt: (qb, kt)),
            pl.BlockSpec((tk, d_pad), lambda qb, kt: (kt, 0)),
            pl.BlockSpec((1, d_pad), lambda qb, kt: (0, 0)),
            pl.BlockSpec((w_pad_classes, s_pad), lambda qb, kt: (0, 0)),
        ],
        out_specs=pl.BlockSpec((tq, w_pad_classes), lambda qb, kt: (qb, 0)),
        scratch_shapes=[
            pltpu.VMEM((s_pad, d_pad), jnp.float32),
            pltpu.VMEM((tq, d_pad), jnp.float32),
        ],
    )

    scores_padded = pl.pallas_call(
        _proto_kernel,
        out_shape=jax.ShapeDtypeStruct((q_pad, w_pad_classes), jnp.float32),
        grid_spec=grid_spec,
        compiler_params=pltpu.CompilerParams(
            # query-block axis parallel (2 TCs on v7x), reduction axis arbitrary
            dimension_semantics=("parallel", "arbitrary"),
        ),
    )(xs, xq, w_p, b_p, onehot)

    return scores_padded[:n_query, :n_way]


def _reference_f32(support_images, support_labels, query_images, w, b):
    """Pure-JAX f32 reference mirroring the PyTorch forward exactly."""
    n_s = support_images.shape[0]
    n_q = query_images.shape[0]
    xs = jnp.reshape(support_images, (n_s, -1)).astype(jnp.float32)
    xq = jnp.reshape(query_images, (n_q, -1)).astype(jnp.float32)
    z_support = xs @ w.astype(jnp.float32) + b
    z_query = xq @ w.astype(jnp.float32) + b
    labels_np = np.asarray(support_labels)
    n_way = int(len(np.unique(labels_np)))
    protos = jnp.stack(
        [z_support[np.nonzero(labels_np == c)[0]].mean(0) for c in range(n_way)]
    )
    diff = z_query[:, None, :] - protos[None, :, :]
    return -jnp.sqrt(jnp.sum(diff * diff, axis=-1))


def _reference_bf16(support_images, support_labels, query_images, w, b):
    """Reference matching the kernel's precision (bf16 MXU inputs, f32 accum)."""
    n_s = support_images.shape[0]
    n_q = query_images.shape[0]
    xs = jnp.reshape(support_images, (n_s, -1)).astype(jnp.bfloat16).astype(jnp.float32)
    xq = jnp.reshape(query_images, (n_q, -1)).astype(jnp.bfloat16).astype(jnp.float32)
    w32 = jnp.asarray(w).astype(jnp.bfloat16).astype(jnp.float32)
    z_support = xs @ w32 + b
    z_query = xq @ w32 + b
    labels_np = np.asarray(support_labels)
    n_way = int(len(np.unique(labels_np)))
    protos = jnp.stack(
        [z_support[np.nonzero(labels_np == c)[0]].mean(0) for c in range(n_way)]
    )
    diff = z_query[:, None, :] - protos[None, :, :]
    return -jnp.sqrt(jnp.sum(diff * diff, axis=-1))


if __name__ == "__main__":
    key = jax.random.PRNGKey(0)
    k_sup, k_qry, k_w = jax.random.split(key, 3)

    # Small episode: 2-way, 2-shot, 4 queries; images are (C=4, H=8, W=8) NCHW.
    n_way, n_shot, n_query = 2, 2, 4
    C, H, W = 4, 8, 8
    D = 32

    support_images = jax.random.normal(k_sup, (n_way * n_shot, C, H, W), jnp.float32)
    query_images = jax.random.normal(k_qry, (n_query, C, H, W), jnp.float32)
    support_labels = jnp.array([0, 1, 0, 1], dtype=jnp.int32)

    # Deterministic synthetic backbone parameters (Flatten + Linear).
    w = jax.random.normal(k_w, (C * H * W, D), jnp.float32) * 0.05
    b = jnp.zeros((D,), jnp.float32)

    # tk=128 forces two K tiles on this toy F=256, exercising the accumulator path.
    scores = prototypical_forward(support_images, support_labels, query_images,
                                  w, b, tk=128)
    scores = jax.block_until_ready(scores)
    assert scores.shape == (n_query, n_way), scores.shape

    # Tight check vs a reference with the kernel's bf16-input / f32-accum numerics.
    ref_bf16 = _reference_bf16(support_images, support_labels, query_images, w, b)
    np.testing.assert_allclose(np.asarray(scores), np.asarray(ref_bf16),
                               rtol=1e-3, atol=1e-3)

    # Loose check vs the exact f32 PyTorch-semantics reference (bf16 MXU inputs).
    ref_f32 = _reference_f32(support_images, support_labels, query_images, w, b)
    np.testing.assert_allclose(np.asarray(scores), np.asarray(ref_f32),
                               rtol=3e-2, atol=3e-2)

    print("KERNEL_OK")
</pallas_src>

<mosaic_0001>
module attributes {stable_mosaic.version = 11 : i64} {
  func.func @_proto_kernel(%arg0: i32, %arg1: i32, %arg2: memref<16x128xbf16, #tpu.memory_space<vmem>>, %arg3: memref<16x128xbf16, #tpu.memory_space<vmem>>, %arg4: memref<128x128xbf16, #tpu.memory_space<vmem>>, %arg5: memref<1x128xf32, #tpu.memory_space<vmem>>, %arg6: memref<128x16xf32, #tpu.memory_space<vmem>>, %arg7: memref<16x128xf32, #tpu.memory_space<vmem>>, %arg8: memref<16x128xf32, #tpu.memory_space<vmem>>, %arg9: memref<16x128xf32, #tpu.memory_space<vmem>>) attributes {dimension_semantics = [#tpu.dimension_semantics<parallel>, #tpu.dimension_semantics<arbitrary>], iteration_bounds = array<i64: 1, 2>, scalar_prefetch = 0 : i64, scratch_operands = 2 : i64, tpu.core_type = #tpu.core_type<tc>, window_params = [{transform_indices = @transform_0, window_bounds = array<i64: 16, 128>}, {transform_indices = @transform_1, window_bounds = array<i64: 16, 128>}, {transform_indices = @transform_2, window_bounds = array<i64: 128, 128>}, {pipeline_mode = #tpu.pipeline_mode<synchronous>, transform_indices = @transform_3, window_bounds = array<i64: 1, 128>}, {pipeline_mode = #tpu.pipeline_mode<synchronous>, transform_indices = @transform_4, window_bounds = array<i64: 128, 16>}, {transform_indices = @transform_5, window_bounds = array<i64: 16, 128>}]} {
    %c0_i32 = arith.constant 0 : i32
    %0 = arith.cmpi eq, %arg1, %c0_i32 : i32
    %1 = arith.extui %0 : i1 to i32
    %c0_i32_0 = arith.constant 0 : i32
    %2 = arith.cmpi ne, %1, %c0_i32_0 : i32
    scf.if %2 {
      %cst_16 = arith.constant 0.000000e+00 : f32
      %17 = vector.broadcast %cst_16 : f32 to vector<16x128xf32>
      %c0_17 = arith.constant 0 : index
      %c0_18 = arith.constant 0 : index
      %18 = vector.load %arg8[%c0_17, %c0_18] : memref<16x128xf32, #tpu.memory_space<vmem>>, vector<16x128xf32>
      tpu.vector_store %arg8[%c0_17, %c0_18], %17 {strides = array<i32>} : memref<16x128xf32, #tpu.memory_space<vmem>>, vector<16x128xf32>,
      %cst_19 = arith.constant 0.000000e+00 : f32
      %19 = vector.broadcast %cst_19 : f32 to vector<16x128xf32>
      %c0_20 = arith.constant 0 : index
      %c0_21 = arith.constant 0 : index
      %20 = vector.load %arg9[%c0_20, %c0_21] : memref<16x128xf32, #tpu.memory_space<vmem>>, vector<16x128xf32>
      tpu.vector_store %arg9[%c0_20, %c0_21], %19 {strides = array<i32>} : memref<16x128xf32, #tpu.memory_space<vmem>>, vector<16x128xf32>,
    } else {
    }
    %c0 = arith.constant 0 : index
    %c0_1 = arith.constant 0 : index
    %3 = vector.load %arg4[%c0, %c0_1] : memref<128x128xbf16, #tpu.memory_space<vmem>>, vector<128x128xbf16>
    %c0_2 = arith.constant 0 : index
    %c0_3 = arith.constant 0 : index
    %4 = vector.load %arg8[%c0_2, %c0_3] : memref<16x128xf32, #tpu.memory_space<vmem>>, vector<16x128xf32>
    %c0_4 = arith.constant 0 : index
    %c0_5 = arith.constant 0 : index
    %5 = vector.load %arg2[%c0_4, %c0_5] : memref<16x128xbf16, #tpu.memory_space<vmem>>, vector<16x128xbf16>
    %cst = arith.constant dense<0.000000e+00> : vector<16x128xf32>
    %6 = tpu.matmul %5, %3, %cst {dimension_numbers = #tpu.dot_dimension_numbers<[1], [0], [0], [1], [0, 0, 1, 1], [], []>} : vector<16x128xbf16>, vector<128x128xbf16>, vector<16x128xf32> -> vector<16x128xf32>
    %7 = arith.addf %4, %6 : vector<16x128xf32>
    %c0_6 = arith.constant 0 : index
    %c0_7 = arith.constant 0 : index
    %8 = vector.load %arg8[%c0_6, %c0_7] : memref<16x128xf32, #tpu.memory_space<vmem>>, vector<16x128xf32>
    tpu.vector_store %arg8[%c0_6, %c0_7], %7 {strides = array<i32>} : memref<16x128xf32, #tpu.memory_space<vmem>>, vector<16x128xf32>,
    %c0_8 = arith.constant 0 : index
    %c0_9 = arith.constant 0 : index
    %9 = vector.load %arg9[%c0_8, %c0_9] : memref<16x128xf32, #tpu.memory_space<vmem>>, vector<16x128xf32>
    %c0_10 = arith.constant 0 : index
    %c0_11 = arith.constant 0 : index
    %10 = vector.load %arg3[%c0_10, %c0_11] : memref<16x128xbf16, #tpu.memory_space<vmem>>, vector<16x128xbf16>
    %cst_12 = arith.constant dense<0.000000e+00> : vector<16x128xf32>
    %11 = tpu.matmul %10, %3, %cst_12 {dimension_numbers = #tpu.dot_dimension_numbers<[1], [0], [0], [1], [0, 0, 1, 1], [], []>} : vector<16x128xbf16>, vector<128x128xbf16>, vector<16x128xf32> -> vector<16x128xf32>
    %12 = arith.addf %9, %11 : vector<16x128xf32>
    %c0_13 = arith.constant 0 : index
    %c0_14 = arith.constant 0 : index
    %13 = vector.load %arg9[%c0_13, %c0_14] : memref<16x128xf32, #tpu.memory_space<vmem>>, vector<16x128xf32>
    tpu.vector_store %arg9[%c0_13, %c0_14], %12 {strides = array<i32>} : memref<16x128xf32, #tpu.memory_space<vmem>>, vector<16x128xf32>,
    %c1_i32 = arith.constant 1 : i32
    %14 = arith.cmpi eq, %arg1, %c1_i32 : i32
    %15 = arith.extui %14 : i1 to i32
    %c0_i32_15 = arith.constant 0 : i32
    %16 = arith.cmpi ne, %15, %c0_i32_15 : i32
    scf.if %16 {
      %c0_16 = arith.constant 0 : index
      %c0_17 = arith.constant 0 : index
      %17 = vector.load %arg5[%c0_16, %c0_17] : memref<1x128xf32, #tpu.memory_space<vmem>>, vector<1x128xf32>
      %c0_18 = arith.constant 0 : index
      %c0_19 = arith.constant 0 : index
      %18 = vector.load %arg8[%c0_18, %c0_19] : memref<16x128xf32, #tpu.memory_space<vmem>>, vector<16x128xf32>
      %19 = vector.broadcast %17 : vector<1x128xf32> to vector<16x128xf32>
      %20 = arith.addf %18, %19 : vector<16x128xf32>
      %c0_20 = arith.constant 0 : index
      %c0_21 = arith.constant 0 : index
      %21 = vector.load %arg9[%c0_20, %c0_21] : memref<16x128xf32, #tpu.memory_space<vmem>>, vector<16x128xf32>
      %22 = vector.broadcast %17 : vector<1x128xf32> to vector<16x128xf32>
      %23 = arith.addf %21, %22 : vector<16x128xf32>
      %c0_22 = arith.constant 0 : index
      %c0_23 = arith.constant 0 : index
      %24 = vector.load %arg6[%c0_22, %c0_23] : memref<128x16xf32, #tpu.memory_space<vmem>>, vector<128x16xf32>
      %cst_24 = arith.constant dense<0.000000e+00> : vector<128x128xf32>
      %25 = tpu.matmul %24, %20, %cst_24 {dimension_numbers = #tpu.dot_dimension_numbers<[1], [0], [0], [1], [0, 0, 1, 1], [], []>} : vector<128x16xf32>, vector<16x128xf32>, vector<128x128xf32> -> vector<128x128xf32>
      %26 = arith.mulf %23, %23 : vector<16x128xf32>
      %cst_25 = arith.constant dense<0.000000e+00> : vector<16xf32>
      %27 = vector.multi_reduction <add>, %26, %cst_25 [1] : vector<16x128xf32> to vector<16xf32>
      %28 = vector.shape_cast %27 : vector<16xf32> to vector<16x1xf32>
      %29 = arith.mulf %25, %25 : vector<128x128xf32>
      %cst_26 = arith.constant dense<0.000000e+00> : vector<128xf32>
      %30 = vector.multi_reduction <add>, %29, %cst_26 [1] : vector<128x128xf32> to vector<128xf32>
      %31 = vector.shape_cast %30 : vector<128xf32> to vector<1x128xf32>
      %cst_27 = arith.constant dense<0.000000e+00> : vector<16x128xf32>
      %32 = tpu.matmul %23, %25, %cst_27 {dimension_numbers = #tpu.dot_dimension_numbers<[1], [1], [0], [0], [0, 0, 1, 0], [], []>} : vector<16x128xf32>, vector<128x128xf32>, vector<16x128xf32> -> vector<16x128xf32>
      %33 = vector.broadcast %28 : vector<16x1xf32> to vector<16x128xf32>
      %34 = vector.broadcast %31 : vector<1x128xf32> to vector<16x128xf32>
      %35 = arith.addf %33, %34 : vector<16x128xf32>
      %cst_28 = arith.constant 2.000000e+00 : f32
      %36 = vector.broadcast %cst_28 : f32 to vector<16x128xf32>
      %37 = arith.mulf %36, %32 : vector<16x128xf32>
      %38 = arith.subf %35, %37 : vector<16x128xf32>
      %cst_29 = arith.constant 0.000000e+00 : f32
      %39 = vector.broadcast %cst_29 : f32 to vector<16x128xf32>
      %40 = arith.maximumf %38, %39 : vector<16x128xf32>
      %41 = math.sqrt %40 : vector<16x128xf32>
      %cst_30 = arith.constant 0.000000e+00 : f32
      %42 = vector.broadcast %cst_30 : f32 to vector<16x128xf32>
      %43 = arith.subf %42, %41 : vector<16x128xf32>
      %c0_31 = arith.constant 0 : index
      %c0_32 = arith.constant 0 : index
      %44 = vector.load %arg7[%c0_31, %c0_32] : memref<16x128xf32, #tpu.memory_space<vmem>>, vector<16x128xf32>
      tpu.vector_store %arg7[%c0_31, %c0_32], %43 {strides = array<i32>} : memref<16x128xf32, #tpu.memory_space<vmem>>, vector<16x128xf32>,
    } else {
    }
    return
  }
  func.func @transform_0(%arg0: i32, %arg1: i32) -> (i32, i32) {
    %c0_i32 = arith.constant 0 : i32
    %c0_i32_0 = arith.constant 0 : i32
    return %c0_i32, %arg1 : i32, i32
  }
  func.func @transform_1(%arg0: i32, %arg1: i32) -> (i32, i32) {
    %c0_i32 = arith.constant 0 : i32
    return %arg0, %arg1 : i32, i32
  }
  func.func @transform_2(%arg0: i32, %arg1: i32) -> (i32, i32) {
    %c0_i32 = arith.constant 0 : i32
    %c0_i32_0 = arith.constant 0 : i32
    return %arg1, %c0_i32 : i32, i32
  }
  func.func @transform_3(%arg0: i32, %arg1: i32) -> (i32, i32) {
    %c0_i32 = arith.constant 0 : i32
    %c0_i32_0 = arith.constant 0 : i32
    %c0_i32_1 = arith.constant 0 : i32
    return %c0_i32, %c0_i32_0 : i32, i32
  }
  func.func @transform_4(%arg0: i32, %arg1: i32) -> (i32, i32) {
    %c0_i32 = arith.constant 0 : i32
    %c0_i32_0 = arith.constant 0 : i32
    %c0_i32_1 = arith.constant 0 : i32
    return %c0_i32, %c0_i32_0 : i32, i32
  }
  func.func @transform_5(%arg0: i32, %arg1: i32) -> (i32, i32) {
    %c0_i32 = arith.constant 0 : i32
    %c0_i32_0 = arith.constant 0 : i32
    return %arg0, %c0_i32 : i32, i32
  }
}

</mosaic_0001>

<llo_original>
// kernel: tpu_custom_call.1
$region0: #{tpu_custom_call.1}
  #allocation0 [shape = 'u32[]', space=smem, size = 0x4, offset = 0x4, fixed_abs, tag = 'smem constant byte address 0x4 - core index']
  #allocation1 [shape = 'u32[72,128]{1,0:T(1,128)}', space=vmem, size = 0x9000, scoped, tag = 'internal scratch']
  #allocation2 [shape = 'f32[16,128]{1,0:T(8,128)}', space=vmem, size = 0x2000, scoped, tag = 'scratch operand']
  #allocation3 [shape = 'f32[16,128]{1,0:T(8,128)}', space=vmem, size = 0x2000, scoped, tag = 'scratch operand']
  %s0 = inlined_call_operand.vmem [shape: bf16[16,256], index: 0, kind: input, shape index: {}]
  %s1 = inlined_call_operand.hbm [shape: bf16[16,256], index: 1, kind: input, shape index: {}]
  %s2 = inlined_call_operand.vmem [shape: bf16[256,128], index: 2, kind: input, shape index: {}]
  %s3 = inlined_call_operand.vmem [shape: f32[1,128], index: 3, kind: input, shape index: {}]
  %s4 = inlined_call_operand.vmem [shape: f32[128,16], index: 4, kind: input, shape index: {}]
  %s5 = inlined_call_operand.hbm [shape: f32[16,128], index: 5, kind: output, shape index: {}]
  %s6 = sld [smem:[#allocation0]]
  $region106: #{tpu_custom_call.1} parent=0
    _
  %s8 = ssub.s32 1, %s6
  %s9 = scalar_select 0, %s8, %s6
  $region1: #{tpu_custom_call.1} parent=0
    #allocation4 [shape = 'u8[8192]{0}', space=vmem, size = 0x2000, scoped, tag = 'input window, operand 0']
    #allocation5 [shape = 'u8[8192]{0}', space=vmem, size = 0x2000, scoped, tag = 'input window, operand 1']
    #allocation6 [shape = 's32[2]{0}', space=sflag, size = 0x8, scoped, tag = 'scoped memory for tpu_custom_call.1']
    #allocation7 [shape = 's32[2]{0}', space=sflag, size = 0x8, scoped, tag = 'scoped memory for tpu_custom_call.1']
    #allocation8 [shape = 'u8[8192]{0}', space=vmem, size = 0x2000, scoped, tag = 'output window, operand 0, single buffered']
    %10 = vsyncpa [#allocation6], 0
    %s11 = scalar_lea.sflag [#allocation6], 1
    %12 = vsyncpa %s11, 0
    %13 = vsyncpa [#allocation7], 0
    loop: start=0, step=1, limit=4
    $region2: #{tpu_custom_call.1} parent=1 // loop_pre_header
      _
    $region3: #{tpu_custom_call.1} parent=1 // loop_header
      %s15 = sphi 0, %s19
      %p16 = scmp.ge.s32.totalorder %s15, 4
      %s22 = sphi 0, %s34
      %s23 = sphi 0, %s30
      %s24 = sphi 0, %s22
      %s25 = sphi 0, %s23
      %s26 = sphi 0, %s24
      %s27 = sphi 0, %s25
      %s37 = sphi 0, %s39
      %s40 = sphi 0, %s37
      %s41 = sphi 0, %s40
      %s57 = sphi 0, %s41
      %s65 = sphi 0, %s67
      %s68 = sphi 0, %s65
      %s69 = sphi 0, %s68
      %s85 = sphi 0, %s69
      %s91 = sphi 0, %s93
      %s94 = sphi 0, %s91
      %s95 = sphi 0, %s94
      %s111 = sphi 0, %s95
      %s115 = sphi 0, %s115
      %s117 = sphi 0, %s115
      %s118 = sphi 0, %s117
      %s132 = sphi 0, %s118
      %s136 = sphi 0, %s136
      %s138 = sphi 0, %s136
      %s139 = sphi 0, %s138
      %s153 = sphi 0, %s139
      %s159 = sphi 0, %s161
      %s162 = sphi 0, %s159
      %s163 = sphi 0, %s162
      %s179 = sphi 0, %s163
    $region4: #{tpu_custom_call.1} parent=1 // loop_header_branch
      %18 = sbr.rel (%p16) target = $region8
    $region5: #{tpu_custom_call.1} parent=1 // loop_body
      %s20 = ssub.s32 %s15, 1
      %s21 = ssub.s32 %s15, 2
      %s28 = sadd.s32 1, %s23
      %p29 = scmp.ge.s32.totalorder %s28, 2
      %s30 = scalar_select %p29, 0, %s28
      %s31 = sadd.s32 1, %s22
      %s32 = scalar_select %p29, %s31, %s22
      %p33 = scmp.ge.s32.totalorder %s32, 1
      %s34 = scalar_select %p33, 0, %s32
      %s35 = ssub.s32 %s23, %s30
      %p36 = scmp.eq.s32.totalorder %s35, 0
      %s38 = sadd.s32 %s37, 1
      %s39 = scalar_select %p36, %s37, %s38
      %p42 = pneg %p36
      %p43 = scmp.eq.s32.totalorder %s15, 1
      %p44 = por %p42, %p43
      %p45 = scmp.ne.s32.totalorder %s37, %s40
      %p46 = scmp.eq.s32.totalorder %s15, 0
      %p47 = por %p45, %p46
      %p48 = scmp.ne.s32.totalorder %s37, %s40
      %p49 = scmp.eq.s32.totalorder %s20, 1
      %p50 = por %p48, %p49
      %p51 = scmp.ne.s32.totalorder %s40, %s41
      %p52 = scmp.eq.s32.totalorder %s20, 0
      %p53 = por %p51, %p52
      %p54 = scmp.ne.s32.totalorder %s40, %s41
      %p55 = scmp.eq.s32.totalorder %s21, 1
      %p56 = por %p54, %p55
      %p58 = scmp.ne.s32.totalorder %s41, %s57
      %p59 = scmp.eq.s32.totalorder %s21, 0
      %p60 = por %p58, %p59
      %s61 = ssub.s32 %s22, %s34
      %s62 = ssub.s32 %s23, %s30
      %s63 = sor.u32 %s61, %s62
      %p64 = scmp.eq.s32.totalorder %s63, 0
      %s66 = sadd.s32 %s65, 1
      %s67 = scalar_select %p64, %s65, %s66
      %p70 = pneg %p64
      %p71 = scmp.eq.s32.totalorder %s15, 1
      %p72 = por %p70, %p71
      %p73 = scmp.ne.s32.totalorder %s65, %s68
      %p74 = scmp.eq.s32.totalorder %s15, 0
      %p75 = por %p73, %p74
      %p76 = scmp.ne.s32.totalorder %s65, %s68
      %p77 = scmp.eq.s32.totalorder %s20, 1
      %p78 = por %p76, %p77
      %p79 = scmp.ne.s32.totalorder %s68, %s69
      %p80 = scmp.eq.s32.totalorder %s20, 0
      %p81 = por %p79, %p80
      %p82 = scmp.ne.s32.totalorder %s68, %s69
      %p83 = scmp.eq.s32.totalorder %s21, 1
      %p84 = por %p82, %p83
      %p86 = scmp.ne.s32.totalorder %s69, %s85
      %p87 = scmp.eq.s32.totalorder %s21, 0
      %p88 = por %p86, %p87
      %s89 = ssub.s32 %s23, %s30
      %p90 = scmp.eq.s32.totalorder %s89, 0
      %s92 = sadd.s32 %s91, 1
      %s93 = scalar_select %p90, %s91, %s92
      %p96 = pneg %p90
      %p97 = scmp.eq.s32.totalorder %s15, 1
      %p98 = por %p96, %p97
      %p99 = scmp.ne.s32.totalorder %s91, %s94
      %p100 = scmp.eq.s32.totalorder %s15, 0
      %p101 = por %p99, %p100
      %p102 = scmp.ne.s32.totalorder %s91, %s94
      %p103 = scmp.eq.s32.totalorder %s20, 1
      %p104 = por %p102, %p103
      %p105 = scmp.ne.s32.totalorder %s94, %s95
      %p106 = scmp.eq.s32.totalorder %s20, 0
      %p107 = por %p105, %p106
      %p108 = scmp.ne.s32.totalorder %s94, %s95
      %p109 = scmp.eq.s32.totalorder %s21, 1
      %p110 = por %p108, %p109
      %p112 = scmp.ne.s32.totalorder %s95, %s111
      %p113 = scmp.eq.s32.totalorder %s21, 0
      %p114 = por %p112, %p113
      %s116 = sadd.s32 %s115, 1
      %p119 = scmp.eq.s32.totalorder %s15, 1
      %p120 = scmp.ne.s32.totalorder %s115, %s117
      %p121 = scmp.eq.s32.totalorder %s15, 0
      %p122 = por %p120, %p121
      %p123 = scmp.ne.s32.totalorder %s115, %s117
      %p124 = scmp.eq.s32.totalorder %s20, 1
      %p125 = por %p123, %p124
      %p126 = scmp.ne.s32.totalorder %s117, %s118
      %p127 = scmp.eq.s32.totalorder %s20, 0
      %p128 = por %p126, %p127
      %p129 = scmp.ne.s32.totalorder %s117, %s118
      %p130 = scmp.eq.s32.totalorder %s21, 1
      %p131 = por %p129, %p130
      %p133 = scmp.ne.s32.totalorder %s118, %s132
      %p134 = scmp.eq.s32.totalorder %s21, 0
      %p135 = por %p133, %p134
      %s137 = sadd.s32 %s136, 1
      %p140 = scmp.eq.s32.totalorder %s15, 1
      %p141 = scmp.ne.s32.totalorder %s136, %s138
      %p142 = scmp.eq.s32.totalorder %s15, 0
      %p143 = por %p141, %p142
      %p144 = scmp.ne.s32.totalorder %s136, %s138
      %p145 = scmp.eq.s32.totalorder %s20, 1
      %p146 = por %p144, %p145
      %p147 = scmp.ne.s32.totalorder %s138, %s139
      %p148 = scmp.eq.s32.totalorder %s20, 0
      %p149 = por %p147, %p148
      %p150 = scmp.ne.s32.totalorder %s138, %s139
      %p151 = scmp.eq.s32.totalorder %s21, 1
      %p152 = por %p150, %p151
      %p154 = scmp.ne.s32.totalorder %s139, %s153
      %p155 = scmp.eq.s32.totalorder %s21, 0
      %p156 = por %p154, %p155
      %s157 = ssub.s32 %s22, %s34
      %p158 = scmp.eq.s32.totalorder %s157, 0
      %s160 = sadd.s32 %s159, 1
      %s161 = scalar_select %p158, %s159, %s160
      %p164 = pneg %p158
      %p165 = scmp.eq.s32.totalorder %s15, 1
      %p166 = por %p164, %p165
      %p167 = scmp.ne.s32.totalorder %s159, %s162
      %p168 = scmp.eq.s32.totalorder %s15, 0
      %p169 = por %p167, %p168
      %p170 = scmp.ne.s32.totalorder %s159, %s162
      %p171 = scmp.eq.s32.totalorder %s20, 1
      %p172 = por %p170, %p171
      %p173 = scmp.ne.s32.totalorder %s162, %s163
      %p174 = scmp.eq.s32.totalorder %s20, 0
      %p175 = por %p173, %p174
      %p176 = scmp.ne.s32.totalorder %s162, %s163
      %p177 = scmp.eq.s32.totalorder %s21, 1
      %p178 = por %p176, %p177
      %p180 = scmp.ne.s32.totalorder %s163, %s179
      %p181 = scmp.eq.s32.totalorder %s21, 0
      %p182 = por %p180, %p181
      %p183 = scmp.le.s32.totalorder 1, %s15
      %p184 = scmp.lt.s32.totalorder %s15, 3
      %p185 = pnand %p183, %p184
      %p186 = pneg %p185
      // Predicated region
      $region9: #{tpu_custom_call.1} parent=5 // pred_check
        _
      $region10: #{tpu_custom_call.1} parent=5 // pred_check_branch
        %188 = sbr.rel (%p185) target = $region12
      $region11: #{tpu_custom_call.1} parent=5 // pred_region
        %s189 = ssub.s32 %s15, 1
        // Predicated region
        $region13: #{tpu_custom_call.1} parent=11 // pred_check
          %p190 = pneg %p128
        $region14: #{tpu_custom_call.1} parent=11 // pred_check_branch
          %192 = sbr.rel (%p190) target = $region16
        $region15: #{tpu_custom_call.1} parent=11 // pred_region
          _
        $region16: #{tpu_custom_call.1} parent=11 // pred_fallthru
          _
        // Predicated region
        $region17: #{tpu_custom_call.1} parent=11 // pred_check
          %p193 = pneg %p149
        $region18: #{tpu_custom_call.1} parent=11 // pred_check_branch
          %195 = sbr.rel (%p193) target = $region20
        $region19: #{tpu_custom_call.1} parent=11 // pred_region
          _
        $region20: #{tpu_custom_call.1} parent=11 // pred_fallthru
          _
      $region12: #{tpu_custom_call.1} parent=5 // pred_fallthru
        _
      %p196 = scmp.lt.s32.totalorder %s15, 2
      // Predicated region
      $region21: #{tpu_custom_call.1} parent=5 // pred_check
        %p197 = pneg %p196
      $region22: #{tpu_custom_call.1} parent=5 // pred_check_branch
        %199 = sbr.rel (%p197) target = $region24
      $region23: #{tpu_custom_call.1} parent=5 // pred_region
        // Predicated region
        $region25: #{tpu_custom_call.1} parent=23 // pred_check
          %p200 = pneg %p47
        $region26: #{tpu_custom_call.1} parent=23 // pred_check_branch
          %202 = sbr.rel (%p200) target = $region28
        $region27: #{tpu_custom_call.1} parent=23 // pred_region
          %s203 = sand.u32 %s37, 1
          %s204 = sand.u32 %s37, 1
          %s205 = smul.addr %s204, 8
          %s206 = scalar_lea.vmem [#allocation4], %s205
          %s207 = smul.addr %s23, 4
          %s208 = scalar_lea.vmem %s0, %s207
          // Predicated region
          $region29: #{tpu_custom_call.1} parent=27 // pred_check
            _
          $region30: #{tpu_custom_call.1} parent=27 // pred_check_branch
            %210 = sbr.rel (0) target = $region32
          $region31: #{tpu_custom_call.1} parent=27 // pred_region
            // Predicated region
            $region33: #{tpu_custom_call.1} parent=31 // pred_check
              _
            $region34: #{tpu_custom_call.1} parent=31 // pred_check_branch
              %212 = sbr.rel target = $region36
            $region35: #{tpu_custom_call.1} parent=31 // pred_region
              // Predicated region
              $region48: #{tpu_custom_call.1} parent=35 // pred_check
                _
              $region49: #{tpu_custom_call.1} parent=35 // pred_check_branch
                %230 = sbr.rel (0) target = $region51
              $region50: #{tpu_custom_call.1} parent=35 // pred_region
                loop: start=0, step=1, limit=1
                $region52: #{tpu_custom_call.1} parent=50 // loop_pre_header
                  _
                $region53: #{tpu_custom_call.1} parent=50 // loop_header
                  %s232 = sphi 0, %s236
                  %p233 = scmp.ge.s32.totalorder %s232, 1
                  %s237 = sphi %s208, %s208
                  %s238 = sphi %s206, %s206
                $region54: #{tpu_custom_call.1} parent=50 // loop_header_branch
                  %235 = sbr.rel (%p233) target = $region58
                $region55: #{tpu_custom_call.1} parent=50 // loop_body
                  _
                $region56: #{tpu_custom_call.1} parent=50 // loop_footer
                  %s236 = sadd.s32 1, %s232
                $region57: #{tpu_custom_call.1} parent=50 // loop_footer_branch
                  %231 = sbr.rel target = $region53
                $region58: #{tpu_custom_call.1} parent=50 // loop_exit
                  _
                %s240 = ssub.s32 16, 1
                loop: start=0, step=1, limit=1
                $region59: #{tpu_custom_call.1} parent=50 // loop_pre_header
                  _
                $region60: #{tpu_custom_call.1} parent=50 // loop_header
                  %s242 = sphi 0, %s246
                  %p243 = scmp.ge.s32.totalorder %s242, 1
                  %s247 = sphi %s208, %s208
                  %s248 = sphi %s206, %s206
                $region61: #{tpu_custom_call.1} parent=50 // loop_header_branch
                  %245 = sbr.rel (%p243) target = $region65
                $region62: #{tpu_custom_call.1} parent=50 // loop_body
                  %v249 = vld [vmem:[%s247] sm:%s240]
                  %250 = vst [vmem:[%s248] sm:%s240] %v249
                  %v251 = vld [vmem:[%s247 + $0x8] sm:%s240]
                  %252 = vst [vmem:[%s248 + $0x4] sm:%s240] %v251
                $region63: #{tpu_custom_call.1} parent=50 // loop_footer
                  %s246 = sadd.s32 1, %s242
                $region64: #{tpu_custom_call.1} parent=50 // loop_footer_branch
                  %241 = sbr.rel target = $region60
                $region65: #{tpu_custom_call.1} parent=50 // loop_exit
                  _
              $region51: #{tpu_custom_call.1} parent=35 // pred_fallthru
                _
            $region36: #{tpu_custom_call.1} parent=31 // pred_fallthru
              _
            // Predicated region
            $region37: #{tpu_custom_call.1} parent=31 // pred_check
              _
            $region38: #{tpu_custom_call.1} parent=31 // pred_check_branch
              %214 = sbr.rel (0) target = $region40
            $region39: #{tpu_custom_call.1} parent=31 // pred_region
              %s216 = ssub.s32 16, 1
              loop: start=0, step=1, limit=1
              $region41: #{tpu_custom_call.1} parent=39 // loop_pre_header
                _
              $region42: #{tpu_custom_call.1} parent=39 // loop_header
                %s218 = sphi 0, %s222
                %p219 = scmp.ge.s32.totalorder %s218, 1
                %s223 = sphi %s208, %s208
                %s224 = sphi %s206, %s206
              $region43: #{tpu_custom_call.1} parent=39 // loop_header_branch
                %221 = sbr.rel (%p219) target = $region47
              $region44: #{tpu_custom_call.1} parent=39 // loop_body
                %v225 = vld [vmem:[%s223] sm:%s216]
                %226 = vst [vmem:[%s224] sm:%s216] %v225
                %v227 = vld [vmem:[%s223 + $0x8] sm:%s216]
                %228 = vst [vmem:[%s224 + $0x4] sm:%s216] %v227
              $region45: #{tpu_custom_call.1} parent=39 // loop_footer
                %s222 = sadd.s32 1, %s218
              $region46: #{tpu_custom_call.1} parent=39 // loop_footer_branch
                %217 = sbr.rel target = $region42
              $region47: #{tpu_custom_call.1} parent=39 // loop_exit
                _
            $region40: #{tpu_custom_call.1} parent=31 // pred_fallthru
              _
          $region32: #{tpu_custom_call.1} parent=27 // pred_fallthru
            _
          %253 = vnop
        $region28: #{tpu_custom_call.1} parent=23 // pred_fallthru
          _
        // Predicated region
        $region66: #{tpu_custom_call.1} parent=23 // pred_check
          %p254 = pneg %p75
        $region67: #{tpu_custom_call.1} parent=23 // pred_check_branch
          %256 = sbr.rel (%p254) target = $region69
        $region68: #{tpu_custom_call.1} parent=23 // pred_region
          %s257 = sand.u32 %s65, 1
          %s258 = scalar_lea.sflag [#allocation6], %s257
          %s259 = sand.u32 %s65, 1
          %s260 = smul.addr %s259, 8
          %s261 = scalar_lea.vmem [#allocation5], %s260
          %s262 = smul.u32 2, %s22
          %264 = vsyncadd %s258, 0
          %s265 = smul.addr %s262, 2
          %s266 = sadd.s32 %s23, %s265
          %s267 = smul.addr %s266, 4
          %s268 = scalar_lea.hbm %s1, %s267
          %s269 = sshll.u32 %s268, 4
          %s270 = int_to_ptr.hbm [resolvable:$true] %s269
          %s271 = sshll.u32 %s261, 4
          %s272 = int_to_ptr.vmem [resolvable:$true] %s271
          %277 = dma.hbm_to_vmem [thread:$0]  %s270, 128, %s272, %s258, 128, 64, 4
        $region69: #{tpu_custom_call.1} parent=23 // pred_fallthru
          _
        // Predicated region
        $region70: #{tpu_custom_call.1} parent=23 // pred_check
          %p278 = pneg %p101
        $region71: #{tpu_custom_call.1} parent=23 // pred_check_branch
          %280 = sbr.rel (%p278) target = $region73
        $region72: #{tpu_custom_call.1} parent=23 // pred_region
          %s281 = smul.u32 16, %s23
          %p282 = scmp.lt.s32.totalorder %s281, 31
          %s283 = scalar_select %p282, %s281, 31
          %s284 = smul.addr %s283, 4
          %s285 = scalar_lea.vmem %s2, %s284
          %s286 = smul.u32 16, %s23
        $region73: #{tpu_custom_call.1} parent=23 // pred_fallthru
          _
      $region24: #{tpu_custom_call.1} parent=5 // pred_fallthru
        _
      %p287 = scmp.le.s32.totalorder 1, %s15
      %p288 = scmp.lt.s32.totalorder %s15, 3
      %p289 = pnand %p287, %p288
      %p290 = pneg %p289
      // Predicated region
      $region74: #{tpu_custom_call.1} parent=5 // pred_check
        _
      $region75: #{tpu_custom_call.1} parent=5 // pred_check_branch
        %292 = sbr.rel (%p289) target = $region77
      $region76: #{tpu_custom_call.1} parent=5 // pred_region
        %s293 = ssub.s32 %s15, 1
        %s294 = sand.u32 %s40, 1
        %s295 = sand.u32 %s40, 1
        %s296 = smul.addr %s295, 8
        %s297 = scalar_lea.vmem [#allocation4], %s296
        // Predicated region
        $region78: #{tpu_custom_call.1} parent=76 // pred_check
          %p298 = pneg %p53
        $region79: #{tpu_custom_call.1} parent=76 // pred_check_branch
          %300 = sbr.rel (%p298) target = $region81
        $region80: #{tpu_custom_call.1} parent=76 // pred_region
          _
        $region81: #{tpu_custom_call.1} parent=76 // pred_fallthru
          _
        %s301 = sand.u32 %s68, 1
        %s302 = scalar_lea.sflag [#allocation6], %s301
        %s303 = sand.u32 %s68, 1
        %s304 = smul.addr %s303, 8
        %s305 = scalar_lea.vmem [#allocation5], %s304
        // Predicated region
        $region82: #{tpu_custom_call.1} parent=76 // pred_check
          %p306 = pneg %p81
        $region83: #{tpu_custom_call.1} parent=76 // pred_check_branch
          %308 = sbr.rel (%p306) target = $region85
        $region84: #{tpu_custom_call.1} parent=76 // pred_region
          %310 = dma.done %s302, 128
        $region85: #{tpu_custom_call.1} parent=76 // pred_fallthru
          _
        %s311 = sand.u32 %s40, 1
        %s312 = sand.u32 %s40, 1
        %s313 = smul.addr %s312, 8
        %s314 = scalar_lea.vmem [#allocation4], %s313
        %p315 = pneg %p53
        %p316 = pneg %p50
        %s317 = sand.u32 %s68, 1
        %s318 = scalar_lea.sflag [#allocation6], %s317
        %s319 = sand.u32 %s68, 1
        %s320 = smul.addr %s319, 8
        %s321 = scalar_lea.vmem [#allocation5], %s320
        %p322 = pneg %p81
        %p323 = pneg %p78
        %s324 = smul.u32 16, %s25
        %p325 = scmp.lt.s32.totalorder %s324, 31
        %s326 = scalar_select %p325, %s324, 31
        %s327 = smul.addr %s326, 4
        %s328 = scalar_lea.vmem %s2, %s327
        %p329 = pneg %p107
        %p330 = pneg %p104
        %p331 = pneg %p128
        %p332 = pneg %p125
        %p333 = pneg %p149
        %p334 = pneg %p146
        %p335 = pneg %p175
        %p336 = pneg %p172
        %s337 = smul.u32 2, %s24
        %s338 = smul.u32 16, %s25
        %p339 = scmp.lt.s32.totalorder %s338, 31
        %s340 = scalar_select %p339, %s338, 31
        %s341 = smul.addr %s340, 4
        %s342 = scalar_lea.vmem %s2, %s341
        %s343 = smul.u32 16, %s25
        %s344 = smul.u32 2, %s24
        %p345 = scmp.eq.s32.totalorder %s25, 0
        // Predicated region
        $region86: #{tpu_custom_call.1} parent=76 // pred_check
          %p346 = pneg %p345
        $region87: #{tpu_custom_call.1} parent=76 // pred_check_branch
          %348 = sbr.rel (%p346) target = $region89
        $region88: #{tpu_custom_call.1} parent=76 // pred_region
          %349 = vst [vmem:[#allocation2] sm:$0xff] 0.0
          %350 = vst [vmem:[#allocation2 + $0x8] sm:$0xff] 0.0
          %351 = vst [vmem:[#allocation3] sm:$0xff] 0.0
          %352 = vst [vmem:[#allocation3 + $0x8] sm:$0xff] 0.0
        $region89: #{tpu_custom_call.1} parent=76 // pred_fallthru
          _
        %v353 = vld [vmem:[%s342] sm:$0xf]
        %v354 = vld [vmem:[%s342 + $0x4] sm:$0xf]
        %v355 = vld [vmem:[%s342 + $0x8] sm:$0xf]
        %v356 = vld [vmem:[%s342 + $0xc] sm:$0xf]
        %v357 = vld [vmem:[%s342 + $0x10] sm:$0xf]
        %v358 = vld [vmem:[%s342 + $0x14] sm:$0xf]
        %v359 = vld [vmem:[%s342 + $0x18] sm:$0xf]
        %v360 = vld [vmem:[%s342 + $0x1c] sm:$0xf]
        %v361 = vld [vmem:[%s342 + $0x20] sm:$0xf]
        %v362 = vld [vmem:[%s342 + $0x24] sm:$0xf]
        %v363 = vld [vmem:[%s342 + $0x28] sm:$0xf]
        %v364 = vld [vmem:[%s342 + $0x2c] sm:$0xf]
        %v365 = vld [vmem:[%s342 + $0x30] sm:$0xf]
        %v366 = vld [vmem:[%s342 + $0x34] sm:$0xf]
        %v367 = vld [vmem:[%s342 + $0x38] sm:$0xf]
        %v368 = vld [vmem:[%s342 + $0x3c] sm:$0xf]
        %v369 = vld [vmem:[#allocation2] sm:$0xff]
        %v370 = vld [vmem:[#allocation2 + $0x8] sm:$0xff]
        %v371 = vld [vmem:[%s297] sm:$0xf]
        %v372 = vld [vmem:[%s297 + $0x4] sm:$0xf]
        %v375 = vunpack.c.l.b16 %v371
        %v376 = vunpack.c.l.b16 %v372
        %v377 = vpack.c.b16 %v376, %v375
        %v395 = vunpack.c.l.b16 %v353
        %v396 = vunpack.c.l.b16 %v354
        %v397 = vunpack.c.l.b16 %v355
        %v398 = vunpack.c.l.b16 %v356
        %v399 = vunpack.c.l.b16 %v357
        %v400 = vunpack.c.l.b16 %v358
        %v401 = vunpack.c.l.b16 %v359
        %v402 = vunpack.c.l.b16 %v360
        %v403 = vunpack.c.l.b16 %v361
        %v404 = vunpack.c.l.b16 %v362
        %v405 = vunpack.c.l.b16 %v363
        %v406 = vunpack.c.l.b16 %v364
        %v407 = vunpack.c.l.b16 %v365
        %v408 = vunpack.c.l.b16 %v366
        %v409 = vunpack.c.l.b16 %v367
        %v410 = vunpack.c.l.b16 %v368
        %v411 = vpack.c.b16 %v396, %v395
        %v412 = vpack.c.b16 %v398, %v397
        %v413 = vpack.c.b16 %v400, %v399
        %v414 = vpack.c.b16 %v402, %v401
        %v415 = vpack.c.b16 %v404, %v403
        %v416 = vpack.c.b16 %v406, %v405
        %v417 = vpack.c.b16 %v408, %v407
        %v418 = vpack.c.b16 %v410, %v409
        %427 = vmatpush.bf16.msra.mxu0 %v418
        %428 = vmatpush.bf16.msra.mxu0 %v417
        %429 = vmatpush.bf16.msra.mxu0 %v416
        %430 = vmatpush.bf16.msra.mxu0 %v415
        %431 = vmatpush.bf16.msra.mxu0 %v414
        %432 = vmatpush.bf16.msra.mxu0 %v413
        %433 = vmatpush.bf16.msra.mxu0 %v412
        %434 = vmatpush.bf16.msra.mxu0 %v411
        %435 = vmatmul.bf16.gmra.mxu0 %v377
        %v436 = vpop.f32.mrf.mxu0
        %v437 = vadd.f32 0.0, %v436
        %v438 = vpop.f32.mrf.mxu0
        %v439 = vadd.f32 0.0, %v438
        %440 = vdwg.mxu0
        %v441 = vadd.f32 %v369, %v437
        %v442 = vadd.f32 %v370, %v439
        %443 = vst [vmem:[#allocation2] sm:$0xff] %v441
        %444 = vst [vmem:[#allocation2 + $0x8] sm:$0xff] %v442
        %v445 = vld [vmem:[#allocation3] sm:$0xff]
        %v446 = vld [vmem:[#allocation3 + $0x8] sm:$0xff]
        %v447 = vld [vmem:[%s305] sm:$0xf]
        %v448 = vld [vmem:[%s305 + $0x4] sm:$0xf]
        %v451 = vunpack.c.l.b16 %v447
        %v452 = vunpack.c.l.b16 %v448
        %v453 = vpack.c.b16 %v452, %v451
        %455 = vmatpush.bf16.msra.mxu0 %v418
        %456 = vmatpush.bf16.msra.mxu0 %v417
        %457 = vmatpush.bf16.msra.mxu0 %v416
        %458 = vmatpush.bf16.msra.mxu0 %v415
        %459 = vmatpush.bf16.msra.mxu0 %v414
        %460 = vmatpush.bf16.msra.mxu0 %v413
        %461 = vmatpush.bf16.msra.mxu0 %v412
        %462 = vmatpush.bf16.msra.mxu0 %v411
        %463 = vmatmul.bf16.gmra.mxu0 %v453
        %v464 = vpop.f32.mrf.mxu0
        %v465 = vadd.f32 0.0, %v464
        %v466 = vpop.f32.mrf.mxu0
        %v467 = vadd.f32 0.0, %v466
        %468 = vdwg.mxu0
        %v469 = vadd.f32 %v445, %v465
        %v470 = vadd.f32 %v446, %v467
        %471 = vst [vmem:[#allocation3] sm:$0xff] %v469
        %472 = vst [vmem:[#allocation3 + $0x8] sm:$0xff] %v470
        %p473 = scmp.eq.s32.totalorder %s25, 1
        // Predicated region
        $region90: #{tpu_custom_call.1} parent=76 // pred_check
          %p474 = pneg %p473
        $region91: #{tpu_custom_call.1} parent=76 // pred_check_branch
          %476 = sbr.rel (%p474) target = $region93
        $region92: #{tpu_custom_call.1} parent=76 // pred_region
          %v477 = vld [vmem:[%s3] sm:$0x1]
          %v478 = vld [vmem:[#allocation2] sm:$0xff]
          %v479 = vld [vmem:[#allocation2 + $0x8] sm:$0xff]
          %v481 = vperm.slane %v477, 0
          %v483 = vadd.f32 %v478, %v481
          %v484 = vadd.f32 %v479, %v481
          %v485 = vld [vmem:[#allocation3] sm:$0xff]
          %v486 = vld [vmem:[#allocation3 + $0x8] sm:$0xff]
          %v487 = vadd.f32 %v485, %v481
          %v488 = vadd.f32 %v486, %v481
          %v489 = vld [vmem:[%s4] sm:$0xff]
          %v490 = vld [vmem:[%s4 + $0x8] sm:$0xff]
          %v491 = vld [vmem:[%s4 + $0x10] sm:$0xff]
          %v492 = vld [vmem:[%s4 + $0x18] sm:$0xff]
          %v493 = vld [vmem:[%s4 + $0x20] sm:$0xff]
          %v494 = vld [vmem:[%s4 + $0x28] sm:$0xff]
          %v495 = vld [vmem:[%s4 + $0x30] sm:$0xff]
          %v496 = vld [vmem:[%s4 + $0x38] sm:$0xff]
          %v497 = vld [vmem:[%s4 + $0x40] sm:$0xff]
          %v498 = vld [vmem:[%s4 + $0x48] sm:$0xff]
          %v499 = vld [vmem:[%s4 + $0x50] sm:$0xff]
          %v500 = vld [vmem:[%s4 + $0x58] sm:$0xff]
          %v501 = vld [vmem:[%s4 + $0x60] sm:$0xff]
          %v502 = vld [vmem:[%s4 + $0x68] sm:$0xff]
          %v503 = vld [vmem:[%s4 + $0x70] sm:$0xff]
          %v504 = vld [vmem:[%s4 + $0x78] sm:$0xff]
          %vm505 = vcmask 130048
          %v507 = vsel %vm505, %v489, 0
          %v510 = vsel %vm505, %v490, 0
          %v513 = vsel %vm505, %v491, 0
          %v516 = vsel %vm505, %v492, 0
          %v519 = vsel %vm505, %v493, 0
          %v522 = vsel %vm505, %v494, 0
          %v525 = vsel %vm505, %v495, 0
          %v528 = vsel %vm505, %v496, 0
          %v531 = vsel %vm505, %v497, 0
          %v534 = vsel %vm505, %v498, 0
          %v537 = vsel %vm505, %v499, 0
          %v540 = vsel %vm505, %v500, 0
          %v543 = vsel %vm505, %v501, 0
          %v546 = vsel %vm505, %v502, 0
          %v549 = vsel %vm505, %v503, 0
          %v552 = vsel %vm505, %v504, 0
          %554 = vmatpush.msra.mxu0 0.0
          %555 = vmatpush.msra.mxu0 0.0
          %556 = vmatpush.msra.mxu0 0.0
          %557 = vmatpush.msra.mxu0 0.0
          %558 = vmatpush.msra.mxu0 0.0
          %559 = vmatpush.msra.mxu0 0.0
          %560 = vmatpush.msra.mxu0 0.0
          %561 = vmatpush.msra.mxu0 0.0
          %562 = vmatpush.msra.mxu0 0.0
          %563 = vmatpush.msra.mxu0 0.0
          %564 = vmatpush.msra.mxu0 0.0
          %565 = vmatpush.msra.mxu0 0.0
          %566 = vmatpush.msra.mxu0 0.0
          %567 = vmatpush.msra.mxu0 0.0
          %568 = vmatpush.msra.mxu0 %v484
          %569 = vmatpush.msra.mxu0 %v483
          %570 = vmatmul.f32.gmra.mxu0 %v507
          %v571 = vpop.f32.mrf.mxu0
          %v572 = vadd.f32 0.0, %v571
          %573 = vmatmul.f32.gmra.mxu0 %v510
          %v574 = vpop.f32.mrf.mxu0
          %v575 = vadd.f32 0.0, %v574
          %576 = vmatmul.f32.gmra.mxu0 %v513
          %v577 = vpop.f32.mrf.mxu0
          %v578 = vadd.f32 0.0, %v577
          %579 = vmatmul.f32.gmra.mxu0 %v516
          %v580 = vpop.f32.mrf.mxu0
          %v581 = vadd.f32 0.0, %v580
          %582 = vmatmul.f32.gmra.mxu0 %v519
          %v583 = vpop.f32.mrf.mxu0
          %v584 = vadd.f32 0.0, %v583
          %585 = vmatmul.f32.gmra.mxu0 %v522
          %v586 = vpop.f32.mrf.mxu0
          %v587 = vadd.f32 0.0, %v586
          %588 = vmatmul.f32.gmra.mxu0 %v525
          %v589 = vpop.f32.mrf.mxu0
          %v590 = vadd.f32 0.0, %v589
          %591 = vmatmul.f32.gmra.mxu0 %v528
          %v592 = vpop.f32.mrf.mxu0
          %v593 = vadd.f32 0.0, %v592
          %594 = vmatmul.f32.gmra.mxu0 %v531
          %v595 = vpop.f32.mrf.mxu0
          %v596 = vadd.f32 0.0, %v595
          %597 = vmatmul.f32.gmra.mxu0 %v534
          %v598 = vpop.f32.mrf.mxu0
          %v599 = vadd.f32 0.0, %v598
          %600 = vmatmul.f32.gmra.mxu0 %v537
          %v601 = vpop.f32.mrf.mxu0
          %v602 = vadd.f32 0.0, %v601
          %603 = vmatmul.f32.gmra.mxu0 %v540
          %v604 = vpop.f32.mrf.mxu0
          %v605 = vadd.f32 0.0, %v604
          %606 = vmatmul.f32.gmra.mxu0 %v543
          %v607 = vpop.f32.mrf.mxu0
          %v608 = vadd.f32 0.0, %v607
          %609 = vmatmul.f32.gmra.mxu0 %v546
          %v610 = vpop.f32.mrf.mxu0
          %v611 = vadd.f32 0.0, %v610
          %612 = vmatmul.f32.gmra.mxu0 %v549
          %v613 = vpop.f32.mrf.mxu0
          %v614 = vadd.f32 0.0, %v613
          %615 = vmatmul.f32.gmra.mxu0 %v552
          %v616 = vpop.f32.mrf.mxu0
          %v617 = vadd.f32 0.0, %v616
          %618 = vdwg.mxu0
          %v619 = vmul.f32 %v487, %v487
          %v620 = vmul.f32 %v488, %v488
          %621 = vadd.xlane.f32.xlu0 %v619
          %v622 = vpop.xlane.xlu0 %621
          %623 = vadd.xlane.f32.xlu0 %v620
          %v624 = vpop.xlane.xlu0 %623
          %v625 = vmul.f32 %v572, %v572
          %v626 = vmul.f32 %v575, %v575
          %v627 = vmul.f32 %v578, %v578
          %v628 = vmul.f32 %v581, %v581
          %v629 = vmul.f32 %v584, %v584
          %v630 = vmul.f32 %v587, %v587
          %v631 = vmul.f32 %v590, %v590
          %v632 = vmul.f32 %v593, %v593
          %v633 = vmul.f32 %v596, %v596
          %v634 = vmul.f32 %v599, %v599
          %v635 = vmul.f32 %v602, %v602
          %v636 = vmul.f32 %v605, %v605
          %v637 = vmul.f32 %v608, %v608
          %v638 = vmul.f32 %v611, %v611
          %v639 = vmul.f32 %v614, %v614
          %v640 = vmul.f32 %v617, %v617
          %641 = vadd.xlane.f32.xlu0 %v625
          %v642 = vpop.xlane.xlu0 %641
          %643 = vadd.xlane.f32.xlu0 %v626
          %v644 = vpop.xlane.xlu0 %643
          %645 = vadd.xlane.f32.xlu0 %v627
          %v646 = vpop.xlane.xlu0 %645
          %647 = vadd.xlane.f32.xlu0 %v628
          %v648 = vpop.xlane.xlu0 %647
          %649 = vadd.xlane.f32.xlu0 %v629
          %v650 = vpop.xlane.xlu0 %649
          %651 = vadd.xlane.f32.xlu0 %v630
          %v652 = vpop.xlane.xlu0 %651
          %653 = vadd.xlane.f32.xlu0 %v631
          %v654 = vpop.xlane.xlu0 %653
          %655 = vadd.xlane.f32.xlu0 %v632
          %v656 = vpop.xlane.xlu0 %655
          %657 = vadd.xlane.f32.xlu0 %v633
          %v658 = vpop.xlane.xlu0 %657
          %659 = vadd.xlane.f32.xlu0 %v634
          %v660 = vpop.xlane.xlu0 %659
          %661 = vadd.xlane.f32.xlu0 %v635
          %v662 = vpop.xlane.xlu0 %661
          %663 = vadd.xlane.f32.xlu0 %v636
          %v664 = vpop.xlane.xlu0 %663
          %665 = vadd.xlane.f32.xlu0 %v637
          %v666 = vpop.xlane.xlu0 %665
          %667 = vadd.xlane.f32.xlu0 %v638
          %v668 = vpop.xlane.xlu0 %667
          %669 = vadd.xlane.f32.xlu0 %v639
          %v670 = vpop.xlane.xlu0 %669
          %671 = vadd.xlane.f32.xlu0 %v640
          %v672 = vpop.xlane.xlu0 %671
          %673 = vmatpush.xpose.msra.mxu0 %v617
          %674 = vmatpush.xpose.msra.mxu0 %v614
          %675 = vmatpush.xpose.msra.mxu0 %v611
          %676 = vmatpush.xpose.msra.mxu0 %v608
          %677 = vmatpush.xpose.msra.mxu0 %v605
          %678 = vmatpush.xpose.msra.mxu0 %v602
          %679 = vmatpush.xpose.msra.mxu0 %v599
          %680 = vmatpush.xpose.msra.mxu0 %v596
          %681 = vmatpush.xpose.msra.mxu0 %v593
          %682 = vmatpush.xpose.msra.mxu0 %v590
          %683 = vmatpush.xpose.msra.mxu0 %v587
          %684 = vmatpush.xpose.msra.mxu0 %v584
          %685 = vmatpush.xpose.msra.mxu0 %v581
          %686 = vmatpush.xpose.msra.mxu0 %v578
          %687 = vmatpush.xpose.msra.mxu0 %v575
          %688 = vmatpush.xpose.msra.mxu0 %v572
          %689 = vmatmul.f32.gmra.mxu0 %v487
          %v690 = vpop.f32.mrf.mxu0
          %v691 = vadd.f32 0.0, %v690
          %692 = vmatmul.f32.gmra.mxu0 %v488
          %v693 = vpop.f32.mrf.mxu0
          %v694 = vadd.f32 0.0, %v693
          %695 = vdwg.mxu0
          %v712 = vlaneseq
          %v713 = vand.u32 %v712, 127
          %v714 = vperm.slane %v642, %v713
          %v715 = vadd.s32 %v713, 4294967288
          %v716 = vperm.slane %v644, %v715
          %vm717 = vcmask 130112
          %v718 = vsel %vm717, %v716, %v714
          %v719 = vadd.s32 %v713, 4294967280
          %v720 = vperm.slane %v646, %v719
          %vm721 = vcmask 195712
          %v722 = vsel %vm721, %v720, %v718
          %v723 = vadd.s32 %v713, 4294967272
          %v724 = vperm.slane %v648, %v723
          %vm725 = vcmask 261312
          %v726 = vsel %vm725, %v724, %v722
          %v727 = vadd.s32 %v713, 4294967264
          %v728 = vperm.slane %v650, %v727
          %vm729 = vcmask 326912
          %v730 = vsel %vm729, %v728, %v726
          %v731 = vadd.s32 %v713, 4294967256
          %v732 = vperm.slane %v652, %v731
          %vm733 = vcmask 392512
          %v734 = vsel %vm733, %v732, %v730
          %v735 = vadd.s32 %v713, 4294967248
          %v736 = vperm.slane %v654, %v735
          %vm737 = vcmask 458112
          %v738 = vsel %vm737, %v736, %v734
          %v739 = vadd.s32 %v713, 4294967240
          %v740 = vperm.slane %v656, %v739
          %vm741 = vcmask 523712
          %v742 = vsel %vm741, %v740, %v738
          %v743 = vadd.s32 %v713, 4294967232
          %v744 = vperm.slane %v658, %v743
          %vm745 = vcmask 589312
          %v746 = vsel %vm745, %v744, %v742
          %v747 = vadd.s32 %v713, 4294967224
          %v748 = vperm.slane %v660, %v747
          %vm749 = vcmask 654912
          %v750 = vsel %vm749, %v748, %v746
          %v751 = vadd.s32 %v713, 4294967216
          %v752 = vperm.slane %v662, %v751
          %vm753 = vcmask 720512
          %v754 = vsel %vm753, %v752, %v750
          %v755 = vadd.s32 %v713, 4294967208
          %v756 = vperm.slane %v664, %v755
          %vm757 = vcmask 786112
          %v758 = vsel %vm757, %v756, %v754
          %v759 = vadd.s32 %v713, 4294967200
          %v760 = vperm.slane %v666, %v759
          %vm761 = vcmask 851712
          %v762 = vsel %vm761, %v760, %v758
          %v763 = vadd.s32 %v713, 4294967192
          %v764 = vperm.slane %v668, %v763
          %vm765 = vcmask 917312
          %v766 = vsel %vm765, %v764, %v762
          %v767 = vadd.s32 %v713, 4294967184
          %v768 = vperm.slane %v670, %v767
          %vm769 = vcmask 982912
          %v770 = vsel %vm769, %v768, %v766
          %v771 = vadd.s32 %v713, 4294967176
          %v772 = vperm.slane %v672, %v771
          %vm773 = vcmask 1048512
          %v774 = vsel %vm773, %v772, %v770
          %vm775 = vcmask 1042434
          %v776 = vsel %vm775, %v774, %v774
          %vm777 = vcmask 1043459
          %v778 = vsel %vm777, %v774, %v776
          %vm779 = vcmask 1044484
          %v780 = vsel %vm779, %v774, %v778
          %vm781 = vcmask 1045509
          %v782 = vsel %vm781, %v774, %v780
          %vm783 = vcmask 1046534
          %v784 = vsel %vm783, %v774, %v782
          %vm785 = vcmask 1047559
          %v786 = vsel %vm785, %v774, %v784
          %v788 = vadd.f32 %v622, %v786
          %v789 = vadd.f32 %v624, %v786
          %v790 = vmul.f32 %v691, 2.0
          %v791 = vmul.f32 %v694, 2.0
          %v792 = vsub.f32 %v788, %v790
          %v793 = vsub.f32 %v789, %v791
          %v794 = vmax.f32 %v792, 0.0
          %v795 = vmax.f32 %v793, 0.0
          %v796 = vrsqrt.pop %v794
          %v797 = vmul.f32 %v796, %v794
          %v798 = vmul.f32 %v797, %v796
          %v799 = vmul.f32 0.5, %v798
          %v800 = vsub.f32 1.5, %v799
          %v801 = vmul.f32 %v796, %v800
          %v802 = vmul.f32 %v794, %v801
          %vm803 = vcmp.eq.f32.partialorder %v794, inf
          %v804 = vsel %vm803, %v794, %v802
          %vm805 = vcmp.eq.f32.partialorder %v794, 0.0
          %v806 = vand.u32 %v794, 2147483648
          %v807 = vsel %vm805, %v806, %v804
          %v808 = vrsqrt.pop %v795
          %v809 = vmul.f32 %v808, %v795
          %v810 = vmul.f32 %v809, %v808
          %v811 = vmul.f32 0.5, %v810
          %v812 = vsub.f32 1.5, %v811
          %v813 = vmul.f32 %v808, %v812
          %v814 = vmul.f32 %v795, %v813
          %vm815 = vcmp.eq.f32.partialorder %v795, inf
          %v816 = vsel %vm815, %v795, %v814
          %vm817 = vcmp.eq.f32.partialorder %v795, 0.0
          %v818 = vand.u32 %v795, 2147483648
          %v819 = vsel %vm817, %v818, %v816
          %v820 = vsub.f32 0.0, %v807
          %v821 = vsub.f32 0.0, %v819
          %822 = vst [vmem:[#allocation8] sm:$0xff] %v820
          %823 = vst [vmem:[#allocation8 + $0x8] sm:$0xff] %v821
        $region93: #{tpu_custom_call.1} parent=76 // pred_fallthru
          _
        // Predicated region
        $region94: #{tpu_custom_call.1} parent=76 // pred_check
          %p824 = pneg %p172
        $region95: #{tpu_custom_call.1} parent=76 // pred_check_branch
          %826 = sbr.rel (%p824) target = $region97
        $region96: #{tpu_custom_call.1} parent=76 // pred_region
          %s827 = smul.u32 2, %s24
          %829 = vsyncadd [#allocation7], 0
          %s830 = smul.addr %s827, 8
          %s831 = scalar_lea.hbm %s5, %s830
          %s832 = sshll.u32 [#allocation8], 4
          %s833 = int_to_ptr.vmem [resolvable:$true] %s832
          %s834 = sshll.u32 %s831, 4
          %s835 = int_to_ptr.hbm [resolvable:$true] %s834
          %840 = dma.vmem_to_hbm [thread:$0]  %s833, 256, %s835, [#allocation7], 128, 128, 8
        $region97: #{tpu_custom_call.1} parent=76 // pred_fallthru
          _
        // Predicated region
        $region98: #{tpu_custom_call.1} parent=76 // pred_check
          %p841 = pneg %p172
        $region99: #{tpu_custom_call.1} parent=76 // pred_check_branch
          %843 = sbr.rel (%p841) target = $region101
        $region100: #{tpu_custom_call.1} parent=76 // pred_region
          %845 = dma.done [#allocation7], 256
        $region101: #{tpu_custom_call.1} parent=76 // pred_fallthru
          _
      $region77: #{tpu_custom_call.1} parent=5 // pred_fallthru
        _
      %p846 = scmp.le.s32.totalorder 2, %s15
      // Predicated region
      $region102: #{tpu_custom_call.1} parent=5 // pred_check
        %p847 = pneg %p846
      $region103: #{tpu_custom_call.1} parent=5 // pred_check_branch
        %849 = sbr.rel (%p847) target = $region105
      $region104: #{tpu_custom_call.1} parent=5 // pred_region
        %s850 = ssub.s32 %s15, 2
      $region105: #{tpu_custom_call.1} parent=5 // pred_fallthru
        _
    $region6: #{tpu_custom_call.1} parent=1 // loop_footer
      %s19 = sadd.s32 1, %s15
    $region7: #{tpu_custom_call.1} parent=1 // loop_footer_branch
      %14 = sbr.rel target = $region3
    $region8: #{tpu_custom_call.1} parent=1 // loop_exit
      _
    %851 = vsyncpa [#allocation6], 1
    %s852 = scalar_lea.sflag [#allocation6], 1
    %853 = vsyncpa %s852, 1
    %854 = vsyncpa [#allocation7], 1
    %s855 = scalar_lea.sflag [#allocation7], 1
    %856 = vsyncpa %s855, 1

</llo_original>
